<compile_context>
chip_gen: v7x
topology: tpu7x:2x2x1
jax: 0.10.0
libtpu: 0.0.40
codegen_flags: <defaults>
</compile_context>

<pallas_src>
from functools import partial

import jax
import jax.numpy as jnp
from jax import lax
from jax.experimental import pallas as pl
from jax.experimental.pallas import tpu as pltpu


def _pow_chain(x, n):
    """x**n for positive integer n via trace-time-unrolled multiplies (VPU)."""
    acc = None
    base = x
    while n:
        if n & 1:
            acc = base if acc is None else acc * base
        n >>= 1
        if n:
            base = base * base
    return acc


def _gem_kernel(x_ref, o_ref, acc_ref, *, p, eps, l_tile, true_l, mask_tail):
    # x_ref: (r_tile, l_tile) native-dtype block; o_ref: (r_tile, 1);
    # acc_ref: (r_tile, 1) f32 scratch, persists across the L (reduction) axis.
    k = pl.program_id(1)

    @pl.when(k == 0)
    def _init():
        acc_ref[...] = jnp.zeros_like(acc_ref)

    x = x_ref[...].astype(jnp.float32)
    xc = jnp.maximum(x, eps)  # clamp(min=eps)

    p_int = int(round(p))
    if abs(p - p_int) < 1e-12 and 1 <= p_int <= 16:
        # Integer power -> pure VPU multiplies (avoids 2 EUP transcendentals/elem).
        xp = _pow_chain(xc, p_int)
    else:
        # Non-integer power; xc >= eps > 0 so log is safe.
        xp = jnp.exp(p * jnp.log(xc))

    if mask_tail:
        col = k * l_tile + lax.broadcasted_iota(jnp.int32, xp.shape, 1)
        xp = jnp.where(col < true_l, xp, 0.0)

    acc_ref[...] += jnp.sum(xp, axis=-1, keepdims=True)

    @pl.when(k == pl.num_programs(1) - 1)
    def _finalize():
        m = acc_ref[...] * (1.0 / true_l)  # mean over the TRUE length
        if abs(p - 1.0) < 1e-12:
            out = m
        else:
            out = jnp.exp(jnp.log(m) * (1.0 / p))  # m > 0, tiny per-row cost
        o_ref[...] = out.astype(o_ref.dtype)


def generalized_mean_pooling(x, norm=3.0, eps=1e-6, *, max_l_tile=2048,
                             in_block_bytes=4 * 1024 * 1024):
    """x: (B, C, L). Returns (B, C, 1) in x.dtype, matching the PyTorch module
    with output_size=1."""
    assert norm > 0
    B, C, L = x.shape
    BC = B * C
    dtype = x.dtype
    itemsize = jnp.dtype(dtype).itemsize

    x2d = x.reshape(BC, L)  # keep native dtype; upcast inside the kernel

    # --- L (lane) tiling: full L if it fits one block, else multiples of 128 ---
    l_tile = L if L <= max_l_tile else max_l_tile
    num_l = pl.cdiv(L, l_tile)
    L_pad = num_l * l_tile

    # --- row (sublane) tiling: multiple of the dtype packing unit ---
    sub = max(8, 32 // itemsize)               # 8 (f32) / 16 (bf16) / 32 (int8)
    bc_rounded = ((BC + sub - 1) // sub) * sub
    r_budget = max(sub, in_block_bytes // max(1, l_tile * itemsize))
    r_tile = min(1024, (r_budget // sub) * sub, bc_rounded)
    r_tile = max(sub, r_tile)
    num_r = pl.cdiv(BC, r_tile)
    BC_pad = num_r * r_tile

    # Pad only when necessary; padded lanes are masked, padded rows discarded.
    if BC_pad != BC or L_pad != L:
        x2d = jnp.pad(x2d, ((0, BC_pad - BC), (0, L_pad - L)))

    kernel = partial(
        _gem_kernel, p=float(norm), eps=float(eps), l_tile=l_tile,
        true_l=L, mask_tail=(L_pad != L),
    )

    out2d = pl.pallas_call(
        kernel,
        out_shape=jax.ShapeDtypeStruct((BC_pad, 1), dtype),
        grid_spec=pltpu.PrefetchScalarGridSpec(
            num_scalar_prefetch=0,
            grid=(num_r, num_l),
            in_specs=[pl.BlockSpec((r_tile, l_tile), lambda i, k: (i, k))],
            out_specs=pl.BlockSpec((r_tile, 1), lambda i, k: (i, 0)),
            scratch_shapes=[pltpu.VMEM((r_tile, 1), jnp.float32)],
        ),
        compiler_params=pltpu.CompilerParams(
            dimension_semantics=("parallel", "arbitrary"),
            vmem_limit_bytes=32 * 1024 * 1024,
        ),
    )(x2d)

    return out2d[:BC].reshape(B, C, 1)


def _reference(x, norm=3.0, eps=1e-6):
    # Plain-JAX reference mirroring the PyTorch forward.
    xc = jnp.maximum(x.astype(jnp.float32), eps)
    xp = xc ** norm
    m = jnp.mean(xp, axis=-1, keepdims=True)
    return m ** (1.0 / norm)


if __name__ == "__main__":
    key = jax.random.PRNGKey(0)

    # Small shape consistent with the module: (B, C, L) = (2, 4, 16).
    B, C, L = 2, 4, 16
    x = jax.random.normal(key, (B, C, L), dtype=jnp.float32)
    out = jax.block_until_ready(generalized_mean_pooling(x, norm=3.0, eps=1e-6))
    ref = _reference(x, norm=3.0, eps=1e-6)
    assert out.shape == (B, C, 1), out.shape
    assert jnp.allclose(out, ref, atol=1e-5, rtol=1e-5), (
        f"max abs err {jnp.max(jnp.abs(out - ref))}"
    )

    # Non-integer norm exercises the exp/log path; odd L exercises ragged L.
    x2 = jax.random.normal(jax.random.PRNGKey(1), (2, 8, 13), dtype=jnp.float32)
    out2 = jax.block_until_ready(generalized_mean_pooling(x2, norm=2.5, eps=1e-6))
    ref2 = _reference(x2, norm=2.5, eps=1e-6)
    assert jnp.allclose(out2, ref2, atol=1e-5, rtol=1e-5), (
        f"max abs err {jnp.max(jnp.abs(out2 - ref2))}"
    )

    # Exercise the tiled-L reduction axis + tail mask (force small L tiles).
    x3 = jax.random.normal(jax.random.PRNGKey(2), (2, 8, 200), dtype=jnp.float32)
    out3 = jax.block_until_ready(
        generalized_mean_pooling(x3, norm=3.0, eps=1e-6, max_l_tile=128))
    ref3 = _reference(x3, norm=3.0, eps=1e-6)
    assert jnp.allclose(out3, ref3, atol=1e-5, rtol=1e-5), (
        f"max abs err {jnp.max(jnp.abs(out3 - ref3))}"
    )

    # Native bf16 input path (no wrapper f32 cast; upcast happens in-kernel).
    x4 = jax.random.normal(jax.random.PRNGKey(3), (2, 8, 64), dtype=jnp.bfloat16)
    out4 = jax.block_until_ready(generalized_mean_pooling(x4, norm=3.0, eps=1e-6))
    ref4 = _reference(x4, norm=3.0, eps=1e-6)
    assert out4.dtype == jnp.bfloat16
    assert jnp.allclose(out4.astype(jnp.float32), ref4, atol=2e-2, rtol=2e-2), (
        f"max abs err {jnp.max(jnp.abs(out4.astype(jnp.float32) - ref4))}"
    )

    print("KERNEL_OK")
</pallas_src>

<mosaic_0001>
module attributes {stable_mosaic.version = 11 : i64} {
  func.func @_gem_kernel(%arg0: i32, %arg1: i32, %arg2: memref<8x16xf32, #tpu.memory_space<vmem>>, %arg3: memref<8x1xf32, #tpu.memory_space<vmem>>, %arg4: memref<8x1xf32, #tpu.memory_space<vmem>>) attributes {dimension_semantics = [#tpu.dimension_semantics<parallel>, #tpu.dimension_semantics<arbitrary>], iteration_bounds = array<i64: 1, 1>, scalar_prefetch = 0 : i64, scratch_operands = 1 : i64, tpu.core_type = #tpu.core_type<tc>, window_params = [{transform_indices = @transform_0, window_bounds = array<i64: 8, 16>}, {transform_indices = @transform_1, window_bounds = array<i64: 8, 1>}]} {
    %c0_i32 = arith.constant 0 : i32
    %0 = arith.cmpi eq, %arg1, %c0_i32 : i32
    %1 = arith.extui %0 : i1 to i32
    %c0_i32_0 = arith.constant 0 : i32
    %2 = arith.cmpi ne, %1, %c0_i32_0 : i32
    scf.if %2 {
      %cst_9 = arith.constant 0.000000e+00 : f32
      %16 = vector.broadcast %cst_9 : f32 to vector<8x1xf32>
      %c0_10 = arith.constant 0 : index
      %c0_11 = arith.constant 0 : index
      %17 = vector.load %arg4[%c0_10, %c0_11] : memref<8x1xf32, #tpu.memory_space<vmem>>, vector<8x1xf32>
      tpu.vector_store %arg4[%c0_10, %c0_11], %16 {strides = array<i32>} : memref<8x1xf32, #tpu.memory_space<vmem>>, vector<8x1xf32>,
    } else {
    }
    %c0 = arith.constant 0 : index
    %c0_1 = arith.constant 0 : index
    %3 = vector.load %arg2[%c0, %c0_1] : memref<8x16xf32, #tpu.memory_space<vmem>>, vector<8x16xf32>
    %cst = arith.constant 9.99999997E-7 : f32
    %4 = vector.broadcast %cst : f32 to vector<8x16xf32>
    %5 = arith.maximumf %3, %4 : vector<8x16xf32>
    %6 = arith.mulf %5, %5 : vector<8x16xf32>
    %7 = arith.mulf %5, %6 : vector<8x16xf32>
    %c0_2 = arith.constant 0 : index
    %c0_3 = arith.constant 0 : index
    %8 = vector.load %arg4[%c0_2, %c0_3] : memref<8x1xf32, #tpu.memory_space<vmem>>, vector<8x1xf32>
    %cst_4 = arith.constant dense<0.000000e+00> : vector<8xf32>
    %9 = vector.multi_reduction <add>, %7, %cst_4 [1] : vector<8x16xf32> to vector<8xf32>
    %10 = vector.shape_cast %9 : vector<8xf32> to vector<8x1xf32>
    %11 = arith.addf %8, %10 : vector<8x1xf32>
    %c0_5 = arith.constant 0 : index
    %c0_6 = arith.constant 0 : index
    %12 = vector.load %arg4[%c0_5, %c0_6] : memref<8x1xf32, #tpu.memory_space<vmem>>, vector<8x1xf32>
    tpu.vector_store %arg4[%c0_5, %c0_6], %11 {strides = array<i32>} : memref<8x1xf32, #tpu.memory_space<vmem>>, vector<8x1xf32>,
    %c0_i32_7 = arith.constant 0 : i32
    %13 = arith.cmpi eq, %arg1, %c0_i32_7 : i32
    %14 = arith.extui %13 : i1 to i32
    %c0_i32_8 = arith.constant 0 : i32
    %15 = arith.cmpi ne, %14, %c0_i32_8 : i32
    scf.if %15 {
      %c0_9 = arith.constant 0 : index
      %c0_10 = arith.constant 0 : index
      %16 = vector.load %arg4[%c0_9, %c0_10] : memref<8x1xf32, #tpu.memory_space<vmem>>, vector<8x1xf32>
      %cst_11 = arith.constant 6.250000e-02 : f32
      %17 = vector.broadcast %cst_11 : f32 to vector<8x1xf32>
      %18 = arith.mulf %16, %17 : vector<8x1xf32>
      %19 = math.log %18 : vector<8x1xf32>
      %cst_12 = arith.constant 0.333333343 : f32
      %20 = vector.broadcast %cst_12 : f32 to vector<8x1xf32>
      %21 = arith.mulf %19, %20 : vector<8x1xf32>
      %22 = math.exp %21 : vector<8x1xf32>
      %c0_13 = arith.constant 0 : index
      %c0_14 = arith.constant 0 : index
      %23 = vector.load %arg3[%c0_13, %c0_14] : memref<8x1xf32, #tpu.memory_space<vmem>>, vector<8x1xf32>
      tpu.vector_store %arg3[%c0_13, %c0_14], %22 {strides = array<i32>} : memref<8x1xf32, #tpu.memory_space<vmem>>, vector<8x1xf32>,
    } else {
    }
    return
  }
  func.func @transform_0(%arg0: i32, %arg1: i32) -> (i32, i32) {
    %c0_i32 = arith.constant 0 : i32
    return %arg0, %arg1 : i32, i32
  }
  func.func @transform_1(%arg0: i32, %arg1: i32) -> (i32, i32) {
    %c0_i32 = arith.constant 0 : i32
    %c0_i32_0 = arith.constant 0 : i32
    return %arg0, %c0_i32 : i32, i32
  }
}

</mosaic_0001>

<llo_original>
// kernel: tpu_custom_call.1
$region0: #{tpu_custom_call.1}
  #allocation0 [shape = 'u32[]', space=smem, size = 0x4, offset = 0x4, fixed_abs, tag = 'smem constant byte address 0x4 - core index']
  #allocation1 [shape = 'u32[144,128]{1,0:T(1,128)}', space=vmem, size = 0x12000, scoped, tag = 'internal scratch']
  #allocation2 [shape = 'f32[8,1]{1,0:T(8,128)}', space=vmem, size = 0x1000, scoped, tag = 'scratch operand']
  %s0 = inlined_call_operand.hbm [shape: f32[8,16], index: 0, kind: input, shape index: {}]
  %s1 = inlined_call_operand.vmem [shape: f32[8,1], index: 1, kind: output, shape index: {}]
  %s2 = sld [smem:[#allocation0]]
  $region26: #{tpu_custom_call.1} parent=0
    _
  %s4 = ssub.s32 1, %s2
  %s5 = scalar_select 0, %s4, %s2
  $region1: #{tpu_custom_call.1} parent=0
    #allocation3 [shape = 'u8[4096]{0}', space=vmem, size = 0x1000, scoped, tag = 'input window, operand 0, single buffered']
    #allocation4 [shape = 's32[1]{0}', space=sflag, size = 0x4, scoped, tag = 'scoped memory for tpu_custom_call.1']
    %6 = vsyncpa [#allocation4], 0
    // Predicated region
    $region2: #{tpu_custom_call.1} parent=1 // pred_check
      _
    $region3: #{tpu_custom_call.1} parent=1 // pred_check_branch
      %8 = sbr.rel (0) target = $region5
    $region4: #{tpu_custom_call.1} parent=1 // pred_region
      %s10 = ssub.s32 128, 128
      %11 = vsyncadd [#allocation4], %s10
      %s13 = sshll.u32 [#allocation3], 4
      %s14 = int_to_ptr.vmem [resolvable:$true] %s13
      %16 = dma.hbm_to_vmem [thread:$0]  %s0, 128, %s14, [#allocation4]
    $region5: #{tpu_custom_call.1} parent=1 // pred_fallthru
      _
    // Predicated region
    $region6: #{tpu_custom_call.1} parent=1 // pred_check
      _
    $region7: #{tpu_custom_call.1} parent=1 // pred_check_branch
      %18 = sbr.rel (0) target = $region9
    $region8: #{tpu_custom_call.1} parent=1 // pred_region
      %19 = dma.done [#allocation4], 128
    $region9: #{tpu_custom_call.1} parent=1 // pred_fallthru
      _
    %p20 = scmp.eq.s32.totalorder 0, 0
    // Predicated region
    $region10: #{tpu_custom_call.1} parent=1 // pred_check
      %p21 = pneg %p20
    $region11: #{tpu_custom_call.1} parent=1 // pred_check_branch
      %23 = sbr.rel (%p21) target = $region13
    $region12: #{tpu_custom_call.1} parent=1 // pred_region
      %vm24 = vcmask 7168
      %25 = vst.msk [vmem:[#allocation2] sm:$0xff] %vm24, 0.0
    $region13: #{tpu_custom_call.1} parent=1 // pred_fallthru
      _
    %v26 = vld [vmem:[#allocation3] sm:$0xff]
    %v27 = vmax.f32 %v26, 1e-06
    %v28 = vmul.f32 %v27, %v27
    %v29 = vmul.f32 %v27, %v28
    %v30 = vld [vmem:[#allocation2] sm:$0xff]
    %vm31 = vcmask 130048
    %v32 = vsel %vm31, %v29, 0.0
    %33 = vadd.xlane.f32.xlu0 %v32
    %v34 = vpop.xlane.xlu0 %33
    %v35 = vadd.f32 %v30, %v34
    %vm36 = vcmask 7168
    %37 = vst.msk [vmem:[#allocation2] sm:$0xff] %vm36, %v35
    // Predicated region
    $region14: #{tpu_custom_call.1} parent=1 // pred_check
      %p38 = pneg %p20
    $region15: #{tpu_custom_call.1} parent=1 // pred_check_branch
      %40 = sbr.rel (%p38) target = $region17
    $region16: #{tpu_custom_call.1} parent=1 // pred_region
      %v41 = vld [vmem:[#allocation2] sm:$0xff]
      %v42 = vmul.f32 %v41, 0.0625
      %v43 = vlog2.pop %v42
      %v44 = vmul.f32 %v43, 0.6931472
      %v45 = vmul.f32 %v44, 0.33333334
      %v46 = vmul.f32 %v45, 1.442695
      %v47 = vpow.pop %v46
      %48 = vst.msk [vmem:[%s1] sm:$0xff] %vm36, %v47
    $region17: #{tpu_custom_call.1} parent=1 // pred_fallthru
      _
    // Predicated region
    $region18: #{tpu_custom_call.1} parent=1 // pred_check
      _
    $region19: #{tpu_custom_call.1} parent=1 // pred_check_branch
      %50 = sbr.rel (0) target = $region21
    $region20: #{tpu_custom_call.1} parent=1 // pred_region
      _
    $region21: #{tpu_custom_call.1} parent=1 // pred_fallthru
      _
    // Predicated region
    $region22: #{tpu_custom_call.1} parent=1 // pred_check
      _
    $region23: #{tpu_custom_call.1} parent=1 // pred_check_branch
      %52 = sbr.rel (0) target = $region25
    $region24: #{tpu_custom_call.1} parent=1 // pred_region
      _
    $region25: #{tpu_custom_call.1} parent=1 // pred_fallthru
      _
    %53 = vsyncpa [#allocation4], 1

</llo_original>
